<compile_context>
chip_gen: v5e
topology: v5e:2x2
jax: 0.10.0
libtpu: 0.0.40
codegen_flags: <defaults>
</compile_context>

<pallas_src>
import jax
import jax.numpy as jnp
import numpy as np
from jax.experimental import pallas as pl
from jax.experimental.pallas import tpu as pltpu

NUM_CLASSES = 6
SMOOTH = 1e-6


def _make_dice_sums_kernel(hw, chunk, n_per_split, needs_mask):
    """Builds the kernel, closed over the static spatial geometry."""

    def kernel(logits_ref, targets_ref, inter_ref, union_ref):
        # logits_ref : (1, C, CHUNK)  bf16/f32 (upcast to f32 here)
        # targets_ref: (1, 1, CHUNK)  int8
        # inter_ref / union_ref : (1, 1, C, 1) f32, accumulated over grid axis 2
        j = pl.program_id(2)

        @pl.when(j == 0)
        def _():
            inter_ref[...] = jnp.zeros_like(inter_ref)
            union_ref[...] = jnp.zeros_like(union_ref)

        x = logits_ref[0].astype(jnp.float32)        # (C, CHUNK)
        t = targets_ref[0].astype(jnp.int32)         # (1, CHUNK)

        # Numerically-stable softmax over the channel (sublane) axis; the
        # normalization reciprocal goes to the EUP slot instead of a VPU divide.
        m = jnp.max(x, axis=0, keepdims=True)
        e = jnp.exp(x - m)
        denom = jnp.sum(e, axis=0, keepdims=True)    # >= 1, safe to invert
        probs = e * pl.reciprocal(denom, approx=True)  # (C, CHUNK)

        # One-hot(targets) along the channel axis via iota compare (never
        # materialize a separate (C, CHUNK) one-hot tensor in HBM).
        class_ids = jax.lax.broadcasted_iota(jnp.int32, x.shape, 0)  # (C, CHUNK)

        if needs_mask:
            # Global-column validity mask for the padded spatial tail.
            base = (pl.program_id(1) * n_per_split + j) * chunk
            col = jax.lax.broadcasted_iota(jnp.int32, (1, chunk), 1) + base
            valid = col < hw                                     # (1, CHUNK)
            sel = jnp.logical_and(class_ids == t, valid)         # (C, CHUNK)
            probs_v = jnp.where(valid, probs, 0.0)               # (C, CHUNK)
        else:
            sel = class_ids == t
            probs_v = probs

        inter_part = jnp.sum(jnp.where(sel, probs_v, 0.0),
                             axis=-1, keepdims=True)             # (C, 1)
        union_part = jnp.sum(probs_v + sel.astype(jnp.float32),
                             axis=-1, keepdims=True)             # (C, 1)

        inter_ref[...] += inter_part[None, None]                 # (1,1,C,1)
        union_ref[...] += union_part[None, None]                 # (1,1,C,1)

    return kernel


def dice_loss_pallas(logits, targets, smooth=SMOOTH, chunk=32768,
                     n_spatial_splits=2):
    """logits: (B, C, H, W); targets: (B, H, W) int -> scalar soft-Dice loss.

    Logits are streamed in their native dtype (pass bf16 logits to halve the
    dominant HBM stream); all in-kernel math runs in f32.
    """
    B, C, H, W = logits.shape
    HW = H * W
    assert C <= 127, "int8 target stream assumes fewer than 128 classes"

    # Spatial tiling: chunk is a multiple of 128 and no larger than needed.
    chunk = max(128, (chunk // 128) * 128)
    chunk = min(chunk, pl.cdiv(HW, 128) * 128)
    n_chunks = pl.cdiv(HW, chunk)
    n_splits = max(1, min(n_spatial_splits, n_chunks))
    n_per_split = pl.cdiv(n_chunks, n_splits)
    hw_pad = n_splits * n_per_split * chunk
    needs_mask = hw_pad != HW

    # HBM streams: logits kept in their native dtype, targets narrowed to int8.
    logits_flat = logits.reshape(B, C, HW)
    targets_flat = targets.reshape(B, 1, HW).astype(jnp.int8)
    if needs_mask:
        logits_flat = jnp.pad(logits_flat, ((0, 0), (0, 0), (0, hw_pad - HW)))
        targets_flat = jnp.pad(targets_flat, ((0, 0), (0, 0), (0, hw_pad - HW)))

    kernel = _make_dice_sums_kernel(HW, chunk, n_per_split, needs_mask)
    grid = (B, n_splits, n_per_split)

    inter, union = pl.pallas_call(
        kernel,
        out_shape=(
            jax.ShapeDtypeStruct((B, n_splits, C, 1), jnp.float32),
            jax.ShapeDtypeStruct((B, n_splits, C, 1), jnp.float32),
        ),
        grid_spec=pltpu.PrefetchScalarGridSpec(
            num_scalar_prefetch=0,
            grid=grid,
            in_specs=[
                pl.BlockSpec((1, C, chunk),
                             lambda b, s, j: (b, 0, s * n_per_split + j)),
                pl.BlockSpec((1, 1, chunk),
                             lambda b, s, j: (b, 0, s * n_per_split + j)),
            ],
            out_specs=[
                pl.BlockSpec((1, 1, C, 1), lambda b, s, j: (b, s, 0, 0)),
                pl.BlockSpec((1, 1, C, 1), lambda b, s, j: (b, s, 0, 0)),
            ],
        ),
        compiler_params=pltpu.CompilerParams(
            dimension_semantics=("parallel", "parallel", "arbitrary")
        ),
    )(logits_flat, targets_flat)

    # Tiny JAX glue: fold the per-split partials, then the B*C-scalar ratio.
    inter = jnp.sum(inter[..., 0], axis=1)   # (B, C)
    union = jnp.sum(union[..., 0], axis=1)   # (B, C)
    dice_score = (2.0 * inter + smooth) / (union + smooth)
    return jnp.mean(1.0 - dice_score)


def dice_loss_ref(logits, targets, smooth=SMOOTH):
    """Pure-JAX reference mirroring the PyTorch forward."""
    C = logits.shape[1]
    onehot = jax.nn.one_hot(targets, C, dtype=jnp.float32)          # (B,H,W,C)
    onehot = jnp.transpose(onehot, (0, 3, 1, 2))                     # (B,C,H,W)
    probs = jax.nn.softmax(logits.astype(jnp.float32), axis=1)
    inter = jnp.sum(probs * onehot, axis=(2, 3))
    union = jnp.sum(probs + onehot, axis=(2, 3))
    dice = (2.0 * inter + smooth) / (union + smooth)
    return jnp.mean(1.0 - dice)


if __name__ == "__main__":
    key = jax.random.PRNGKey(0)
    k_logits, k_targets = jax.random.split(key)

    B, C, H, W = 2, NUM_CLASSES, 16, 16
    logits = jax.random.normal(k_logits, (B, C, H, W), dtype=jnp.float32)
    targets = jax.random.randint(k_targets, (B, H, W), 0, C, dtype=jnp.int32)

    loss_fn = jax.jit(dice_loss_pallas,
                      static_argnames=("smooth", "chunk", "n_spatial_splits"))

    # f32 logits streamed as-is (module semantics; tolerance covers the
    # approx EUP reciprocal and reduction-order differences).
    loss = jax.block_until_ready(loss_fn(logits, targets))
    ref = jax.block_until_ready(dice_loss_ref(logits, targets))
    np.testing.assert_allclose(np.asarray(loss), np.asarray(ref),
                               rtol=5e-3, atol=5e-3)

    # Recommended deployment path: bf16 logits in HBM (half the traffic).
    loss_bf16 = jax.block_until_ready(loss_fn(logits.astype(jnp.bfloat16),
                                              targets))
    np.testing.assert_allclose(np.asarray(loss_bf16), np.asarray(ref),
                               rtol=2e-2, atol=2e-2)

    # Non-divisible spatial size + small chunk: exercises padded-tail masking
    # and the parallel spatial split.
    H2 = W2 = 20
    logits2 = jax.random.normal(k_logits, (B, C, H2, W2), dtype=jnp.float32)
    targets2 = jax.random.randint(k_targets, (B, H2, W2), 0, C,
                                  dtype=jnp.int32)
    loss2 = jax.block_until_ready(
        loss_fn(logits2, targets2, chunk=256, n_spatial_splits=2))
    ref2 = jax.block_until_ready(dice_loss_ref(logits2, targets2))
    np.testing.assert_allclose(np.asarray(loss2), np.asarray(ref2),
                               rtol=5e-3, atol=5e-3)

    print("KERNEL_OK")
</pallas_src>

<mosaic_0001>
module attributes {stable_mosaic.version = 11 : i64} {
  func.func @kernel(%arg0: i32, %arg1: i32, %arg2: i32, %arg3: memref<1x6x256xf32, #tpu.memory_space<vmem>>, %arg4: memref<1x1x256xi8, #tpu.memory_space<vmem>>, %arg5: memref<1x1x6x1xf32, #tpu.memory_space<vmem>>, %arg6: memref<1x1x6x1xf32, #tpu.memory_space<vmem>>) attributes {dimension_semantics = [#tpu.dimension_semantics<parallel>, #tpu.dimension_semantics<parallel>, #tpu.dimension_semantics<arbitrary>], iteration_bounds = array<i64: 2, 1, 1>, scalar_prefetch = 0 : i64, scratch_operands = 0 : i64, tpu.core_type = #tpu.core_type<tc>, window_params = [{transform_indices = @transform_0, window_bounds = array<i64: 1, 6, 256>}, {transform_indices = @transform_1, window_bounds = array<i64: 1, 1, 256>}, {transform_indices = @transform_2, window_bounds = array<i64: 1, 1, 6, 1>}, {transform_indices = @transform_3, window_bounds = array<i64: 1, 1, 6, 1>}]} {
    %c0_i32 = arith.constant 0 : i32
    %0 = arith.cmpi eq, %arg2, %c0_i32 : i32
    %1 = arith.extui %0 : i1 to i32
    %c0_i32_0 = arith.constant 0 : i32
    %2 = arith.cmpi ne, %1, %c0_i32_0 : i32
    scf.if %2 {
      %cst_26 = arith.constant 0.000000e+00 : f32
      %38 = vector.broadcast %cst_26 : f32 to vector<1x1x6x1xf32>
      %c0_27 = arith.constant 0 : index
      %c0_28 = arith.constant 0 : index
      %c0_29 = arith.constant 0 : index
      %c0_30 = arith.constant 0 : index
      %39 = vector.load %arg5[%c0_27, %c0_28, %c0_29, %c0_30] : memref<1x1x6x1xf32, #tpu.memory_space<vmem>>, vector<1x1x6x1xf32>
      tpu.vector_store %arg5[%c0_27, %c0_28, %c0_29, %c0_30], %38 {strides = array<i32>} : memref<1x1x6x1xf32, #tpu.memory_space<vmem>>, vector<1x1x6x1xf32>,
      %cst_31 = arith.constant 0.000000e+00 : f32
      %40 = vector.broadcast %cst_31 : f32 to vector<1x1x6x1xf32>
      %c0_32 = arith.constant 0 : index
      %c0_33 = arith.constant 0 : index
      %c0_34 = arith.constant 0 : index
      %c0_35 = arith.constant 0 : index
      %41 = vector.load %arg6[%c0_32, %c0_33, %c0_34, %c0_35] : memref<1x1x6x1xf32, #tpu.memory_space<vmem>>, vector<1x1x6x1xf32>
      tpu.vector_store %arg6[%c0_32, %c0_33, %c0_34, %c0_35], %40 {strides = array<i32>} : memref<1x1x6x1xf32, #tpu.memory_space<vmem>>, vector<1x1x6x1xf32>,
    } else {
    }
    %c0 = arith.constant 0 : index
    %c0_1 = arith.constant 0 : index
    %c0_2 = arith.constant 0 : index
    %3 = vector.load %arg3[%c0, %c0_1, %c0_2] : memref<1x6x256xf32, #tpu.memory_space<vmem>>, vector<1x6x256xf32>
    %4 = vector.shape_cast %3 : vector<1x6x256xf32> to vector<6x256xf32>
    %c0_3 = arith.constant 0 : index
    %c0_4 = arith.constant 0 : index
    %c0_5 = arith.constant 0 : index
    %5 = vector.load %arg4[%c0_3, %c0_4, %c0_5] : memref<1x1x256xi8, #tpu.memory_space<vmem>>, vector<1x1x256xi8>
    %6 = vector.shape_cast %5 : vector<1x1x256xi8> to vector<1x256xi8>
    %7 = arith.extsi %6 : vector<1x256xi8> to vector<1x256xi32>
    %cst = arith.constant dense<0xFF800000> : vector<256xf32>
    %8 = vector.multi_reduction <maximumf>, %4, %cst [0] : vector<6x256xf32> to vector<256xf32>
    %9 = vector.shape_cast %8 : vector<256xf32> to vector<1x256xf32>
    %10 = vector.broadcast %9 : vector<1x256xf32> to vector<6x256xf32>
    %11 = arith.subf %4, %10 : vector<6x256xf32>
    %12 = math.exp %11 : vector<6x256xf32>
    %cst_6 = arith.constant dense<0.000000e+00> : vector<256xf32>
    %13 = vector.multi_reduction <add>, %12, %cst_6 [0] : vector<6x256xf32> to vector<256xf32>
    %14 = vector.shape_cast %13 : vector<256xf32> to vector<1x256xf32>
    %15 = tpu.reciprocal %14 {approx = true} : vector<1x256xf32> -> vector<1x256xf32>
    %16 = vector.broadcast %15 : vector<1x256xf32> to vector<6x256xf32>
    %17 = arith.mulf %12, %16 : vector<6x256xf32>
    %18 = tpu.iota {dimensions = array<i32: 0>} : vector<6x256xi32>
    %19 = vector.broadcast %7 : vector<1x256xi32> to vector<6x256xi32>
    %20 = arith.cmpi eq, %18, %19 : vector<6x256xi32>
    %cst_7 = arith.constant 0.000000e+00 : f32
    %21 = vector.broadcast %cst_7 : f32 to vector<6x256xf32>
    %22 = arith.select %20, %17, %21 : vector<6x256xi1>, vector<6x256xf32>
    %cst_8 = arith.constant dense<0.000000e+00> : vector<6xf32>
    %23 = vector.multi_reduction <add>, %22, %cst_8 [1] : vector<6x256xf32> to vector<6xf32>
    %24 = vector.shape_cast %23 : vector<6xf32> to vector<6x1xf32>
    %25 = arith.extui %20 : vector<6x256xi1> to vector<6x256xi32>
    %26 = arith.sitofp %25 : vector<6x256xi32> to vector<6x256xf32>
    %27 = arith.addf %17, %26 : vector<6x256xf32>
    %cst_9 = arith.constant dense<0.000000e+00> : vector<6xf32>
    %28 = vector.multi_reduction <add>, %27, %cst_9 [1] : vector<6x256xf32> to vector<6xf32>
    %29 = vector.shape_cast %28 : vector<6xf32> to vector<6x1xf32>
    %c0_10 = arith.constant 0 : index
    %c0_11 = arith.constant 0 : index
    %c0_12 = arith.constant 0 : index
    %c0_13 = arith.constant 0 : index
    %30 = vector.load %arg5[%c0_10, %c0_11, %c0_12, %c0_13] : memref<1x1x6x1xf32, #tpu.memory_space<vmem>>, vector<1x1x6x1xf32>
    %31 = vector.shape_cast %24 : vector<6x1xf32> to vector<1x1x6x1xf32>
    %32 = arith.addf %30, %31 : vector<1x1x6x1xf32>
    %c0_14 = arith.constant 0 : index
    %c0_15 = arith.constant 0 : index
    %c0_16 = arith.constant 0 : index
    %c0_17 = arith.constant 0 : index
    %33 = vector.load %arg5[%c0_14, %c0_15, %c0_16, %c0_17] : memref<1x1x6x1xf32, #tpu.memory_space<vmem>>, vector<1x1x6x1xf32>
    tpu.vector_store %arg5[%c0_14, %c0_15, %c0_16, %c0_17], %32 {strides = array<i32>} : memref<1x1x6x1xf32, #tpu.memory_space<vmem>>, vector<1x1x6x1xf32>,
    %c0_18 = arith.constant 0 : index
    %c0_19 = arith.constant 0 : index
    %c0_20 = arith.constant 0 : index
    %c0_21 = arith.constant 0 : index
    %34 = vector.load %arg6[%c0_18, %c0_19, %c0_20, %c0_21] : memref<1x1x6x1xf32, #tpu.memory_space<vmem>>, vector<1x1x6x1xf32>
    %35 = vector.shape_cast %29 : vector<6x1xf32> to vector<1x1x6x1xf32>
    %36 = arith.addf %34, %35 : vector<1x1x6x1xf32>
    %c0_22 = arith.constant 0 : index
    %c0_23 = arith.constant 0 : index
    %c0_24 = arith.constant 0 : index
    %c0_25 = arith.constant 0 : index
    %37 = vector.load %arg6[%c0_22, %c0_23, %c0_24, %c0_25] : memref<1x1x6x1xf32, #tpu.memory_space<vmem>>, vector<1x1x6x1xf32>
    tpu.vector_store %arg6[%c0_22, %c0_23, %c0_24, %c0_25], %36 {strides = array<i32>} : memref<1x1x6x1xf32, #tpu.memory_space<vmem>>, vector<1x1x6x1xf32>,
    return
  }
  func.func @transform_0(%arg0: i32, %arg1: i32, %arg2: i32) -> (i32, i32, i32) {
    %c1_i32 = arith.constant 1 : i32
    %0 = arith.muli %arg1, %c1_i32 : i32
    %1 = arith.addi %0, %arg2 : i32
    %c0_i32 = arith.constant 0 : i32
    %c0_i32_0 = arith.constant 0 : i32
    return %arg0, %c0_i32, %1 : i32, i32, i32
  }
  func.func @transform_1(%arg0: i32, %arg1: i32, %arg2: i32) -> (i32, i32, i32) {
    %c1_i32 = arith.constant 1 : i32
    %0 = arith.muli %arg1, %c1_i32 : i32
    %1 = arith.addi %0, %arg2 : i32
    %c0_i32 = arith.constant 0 : i32
    %c0_i32_0 = arith.constant 0 : i32
    return %arg0, %c0_i32, %1 : i32, i32, i32
  }
  func.func @transform_2(%arg0: i32, %arg1: i32, %arg2: i32) -> (i32, i32, i32, i32) {
    %c0_i32 = arith.constant 0 : i32
    %c0_i32_0 = arith.constant 0 : i32
    %c0_i32_1 = arith.constant 0 : i32
    return %arg0, %arg1, %c0_i32, %c0_i32_0 : i32, i32, i32, i32
  }
  func.func @transform_3(%arg0: i32, %arg1: i32, %arg2: i32) -> (i32, i32, i32, i32) {
    %c0_i32 = arith.constant 0 : i32
    %c0_i32_0 = arith.constant 0 : i32
    %c0_i32_1 = arith.constant 0 : i32
    return %arg0, %arg1, %c0_i32, %c0_i32_0 : i32, i32, i32, i32
  }
}

</mosaic_0001>

<llo_original>
// kernel: dice_loss_pallas.1
$region0: #{dice_loss_pallas.1}
  #allocation0 [shape = 'u32[]', space=smem, size = 0x4, offset = 0x4, fixed_abs, tag = 'smem constant byte address 0x4 - core index']
  #allocation1 [shape = 'u32[72,128]{1,0:T(1,128)}', space=vmem, size = 0x9000, scoped, tag = 'internal scratch']
  %s0 = inlined_call_operand.vmem [shape: f32[2,6,256], index: 0, kind: input, shape index: {}]
  %s1 = inlined_call_operand.vmem [shape: s8[2,1,256], index: 1, kind: input, shape index: {}]
  %s2 = inlined_call_operand.vmem [shape: f32[2,1,6,1], index: 2, kind: output, shape index: {0}]
  %s3 = inlined_call_operand.vmem [shape: f32[2,1,6,1], index: 3, kind: output, shape index: {1}]
  %4 = xla_tuple %s2, %s3
  %s5 = sld [smem:[#allocation0]]
  $region53: #{dice_loss_pallas.1} parent=0
    _
  %s7 = ssub.s32 1, %s5
  %s8 = scalar_select 0, %s7, %s5
  loop: start=0, step=1, limit=4
  $region2: #{dice_loss_pallas.1} parent=0 // loop_pre_header
    _
  $region3: #{dice_loss_pallas.1} parent=0 // loop_header
    %s10 = sphi 0, %s14
    %p11 = scmp.ge.s32.totalorder %s10, 4
    %s17 = sphi 0, %s36
    %s18 = sphi 0, %s32
    %s19 = sphi 0, %s28
    %s20 = sphi 0, %s17
    %s21 = sphi 0, %s18
    %s22 = sphi 0, %s19
    %s23 = sphi 0, %s20
    %s24 = sphi 0, %s21
    %s25 = sphi 0, %s22
    %s43 = sphi 0, %s45
    %s46 = sphi 0, %s43
    %s47 = sphi 0, %s46
    %s63 = sphi 0, %s47
    %s73 = sphi 0, %s75
    %s76 = sphi 0, %s73
    %s77 = sphi 0, %s76
    %s93 = sphi 0, %s77
    %s101 = sphi 0, %s103
    %s104 = sphi 0, %s101
    %s105 = sphi 0, %s104
    %s121 = sphi 0, %s105
    %s129 = sphi 0, %s131
    %s132 = sphi 0, %s129
    %s133 = sphi 0, %s132
    %s149 = sphi 0, %s133
  $region4: #{dice_loss_pallas.1} parent=0 // loop_header_branch
    %13 = sbr.rel (%p11) target = $region8
  $region5: #{dice_loss_pallas.1} parent=0 // loop_body
    %s15 = ssub.s32 %s10, 1
    %s16 = ssub.s32 %s10, 2
    %s26 = sadd.s32 1, %s19
    %p27 = scmp.ge.s32.totalorder %s26, 1
    %s28 = scalar_select %p27, 0, %s26
    %s29 = sadd.s32 1, %s18
    %s30 = scalar_select %p27, %s29, %s18
    %p31 = scmp.ge.s32.totalorder %s30, 1
    %s32 = scalar_select %p31, 0, %s30
    %s33 = sadd.s32 1, %s17
    %s34 = scalar_select %p31, %s33, %s17
    %p35 = scmp.ge.s32.totalorder %s34, 2
    %s36 = scalar_select %p35, 0, %s34
    %s37 = sadd.s32 %s18, %s19
    %s38 = sadd.s32 %s32, %s28
    %s39 = ssub.s32 %s17, %s36
    %s40 = ssub.s32 %s37, %s38
    %s41 = sor.u32 %s39, %s40
    %p42 = scmp.eq.s32.totalorder %s41, 0
    %s44 = sadd.s32 %s43, 1
    %s45 = scalar_select %p42, %s43, %s44
    %p48 = pneg %p42
    %p49 = scmp.eq.s32.totalorder %s10, 1
    %p50 = por %p48, %p49
    %p51 = scmp.ne.s32.totalorder %s43, %s46
    %p52 = scmp.eq.s32.totalorder %s10, 0
    %p53 = por %p51, %p52
    %p54 = scmp.ne.s32.totalorder %s43, %s46
    %p55 = scmp.eq.s32.totalorder %s15, 1
    %p56 = por %p54, %p55
    %p57 = scmp.ne.s32.totalorder %s46, %s47
    %p58 = scmp.eq.s32.totalorder %s15, 0
    %p59 = por %p57, %p58
    %p60 = scmp.ne.s32.totalorder %s46, %s47
    %p61 = scmp.eq.s32.totalorder %s16, 1
    %p62 = por %p60, %p61
    %p64 = scmp.ne.s32.totalorder %s47, %s63
    %p65 = scmp.eq.s32.totalorder %s16, 0
    %p66 = por %p64, %p65
    %s67 = sadd.s32 %s18, %s19
    %s68 = sadd.s32 %s32, %s28
    %s69 = ssub.s32 %s17, %s36
    %s70 = ssub.s32 %s67, %s68
    %s71 = sor.u32 %s69, %s70
    %p72 = scmp.eq.s32.totalorder %s71, 0
    %s74 = sadd.s32 %s73, 1
    %s75 = scalar_select %p72, %s73, %s74
    %p78 = pneg %p72
    %p79 = scmp.eq.s32.totalorder %s10, 1
    %p80 = por %p78, %p79
    %p81 = scmp.ne.s32.totalorder %s73, %s76
    %p82 = scmp.eq.s32.totalorder %s10, 0
    %p83 = por %p81, %p82
    %p84 = scmp.ne.s32.totalorder %s73, %s76
    %p85 = scmp.eq.s32.totalorder %s15, 1
    %p86 = por %p84, %p85
    %p87 = scmp.ne.s32.totalorder %s76, %s77
    %p88 = scmp.eq.s32.totalorder %s15, 0
    %p89 = por %p87, %p88
    %p90 = scmp.ne.s32.totalorder %s76, %s77
    %p91 = scmp.eq.s32.totalorder %s16, 1
    %p92 = por %p90, %p91
    %p94 = scmp.ne.s32.totalorder %s77, %s93
    %p95 = scmp.eq.s32.totalorder %s16, 0
    %p96 = por %p94, %p95
    %s97 = ssub.s32 %s17, %s36
    %s98 = ssub.s32 %s18, %s32
    %s99 = sor.u32 %s97, %s98
    %p100 = scmp.eq.s32.totalorder %s99, 0
    %s102 = sadd.s32 %s101, 1
    %s103 = scalar_select %p100, %s101, %s102
    %p106 = pneg %p100
    %p107 = scmp.eq.s32.totalorder %s10, 1
    %p108 = por %p106, %p107
    %p109 = scmp.ne.s32.totalorder %s101, %s104
    %p110 = scmp.eq.s32.totalorder %s10, 0
    %p111 = por %p109, %p110
    %p112 = scmp.ne.s32.totalorder %s101, %s104
    %p113 = scmp.eq.s32.totalorder %s15, 1
    %p114 = por %p112, %p113
    %p115 = scmp.ne.s32.totalorder %s104, %s105
    %p116 = scmp.eq.s32.totalorder %s15, 0
    %p117 = por %p115, %p116
    %p118 = scmp.ne.s32.totalorder %s104, %s105
    %p119 = scmp.eq.s32.totalorder %s16, 1
    %p120 = por %p118, %p119
    %p122 = scmp.ne.s32.totalorder %s105, %s121
    %p123 = scmp.eq.s32.totalorder %s16, 0
    %p124 = por %p122, %p123
    %s125 = ssub.s32 %s17, %s36
    %s126 = ssub.s32 %s18, %s32
    %s127 = sor.u32 %s125, %s126
    %p128 = scmp.eq.s32.totalorder %s127, 0
    %s130 = sadd.s32 %s129, 1
    %s131 = scalar_select %p128, %s129, %s130
    %p134 = pneg %p128
    %p135 = scmp.eq.s32.totalorder %s10, 1
    %p136 = por %p134, %p135
    %p137 = scmp.ne.s32.totalorder %s129, %s132
    %p138 = scmp.eq.s32.totalorder %s10, 0
    %p139 = por %p137, %p138
    %p140 = scmp.ne.s32.totalorder %s129, %s132
    %p141 = scmp.eq.s32.totalorder %s15, 1
    %p142 = por %p140, %p141
    %p143 = scmp.ne.s32.totalorder %s132, %s133
    %p144 = scmp.eq.s32.totalorder %s15, 0
    %p145 = por %p143, %p144
    %p146 = scmp.ne.s32.totalorder %s132, %s133
    %p147 = scmp.eq.s32.totalorder %s16, 1
    %p148 = por %p146, %p147
    %p150 = scmp.ne.s32.totalorder %s133, %s149
    %p151 = scmp.eq.s32.totalorder %s16, 0
    %p152 = por %p150, %p151
    %p153 = scmp.le.s32.totalorder 1, %s10
    %p154 = scmp.lt.s32.totalorder %s10, 3
    %p155 = pnand %p153, %p154
    %p156 = pneg %p155
    // Predicated region
    $region9: #{dice_loss_pallas.1} parent=5 // pred_check
      _
    $region10: #{dice_loss_pallas.1} parent=5 // pred_check_branch
      %158 = sbr.rel (%p155) target = $region12
    $region11: #{dice_loss_pallas.1} parent=5 // pred_region
      %s159 = ssub.s32 %s10, 1
    $region12: #{dice_loss_pallas.1} parent=5 // pred_fallthru
      _
    %p160 = scmp.lt.s32.totalorder %s10, 2
    // Predicated region
    $region13: #{dice_loss_pallas.1} parent=5 // pred_check
      %p161 = pneg %p160
    $region14: #{dice_loss_pallas.1} parent=5 // pred_check_branch
      %163 = sbr.rel (%p161) target = $region16
    $region15: #{dice_loss_pallas.1} parent=5 // pred_region
      // Predicated region
      $region17: #{dice_loss_pallas.1} parent=15 // pred_check
        %p164 = pneg %p53
      $region18: #{dice_loss_pallas.1} parent=15 // pred_check_branch
        %166 = sbr.rel (%p164) target = $region20
      $region19: #{dice_loss_pallas.1} parent=15 // pred_region
        %s167 = sadd.s32 %s18, %s19
        %s168 = smul.u32 2, %s167
        %p169 = scmp.lt.s32.totalorder %s17, 1
        %s170 = scalar_select %p169, %s17, 1
        %p171 = scmp.lt.s32.totalorder %s168, 1
        %s172 = scalar_select %p171, %s168, 1
        %s173 = smul.addr %s170, 2
        %s174 = sadd.s32 %s172, %s173
        %s175 = smul.addr %s174, 8
        %s176 = scalar_lea.vmem %s0, %s175
        %s177 = sadd.s32 %s18, %s19
        %s178 = smul.u32 2, %s177
      $region20: #{dice_loss_pallas.1} parent=15 // pred_fallthru
        _
      // Predicated region
      $region21: #{dice_loss_pallas.1} parent=15 // pred_check
        %p179 = pneg %p83
      $region22: #{dice_loss_pallas.1} parent=15 // pred_check_branch
        %181 = sbr.rel (%p179) target = $region24
      $region23: #{dice_loss_pallas.1} parent=15 // pred_region
        %s182 = sadd.s32 %s18, %s19
        %s183 = smul.u32 2, %s182
        %p184 = scmp.lt.s32.totalorder %s17, 1
        %s185 = scalar_select %p184, %s17, 1
        %p186 = scmp.lt.s32.totalorder %s183, 1
        %s187 = scalar_select %p186, %s183, 1
        %s188 = smul.addr %s185, 2
        %s189 = sadd.s32 %s187, %s188
        %s190 = scalar_lea.vmem %s1, %s189
        %s191 = sadd.s32 %s18, %s19
        %s192 = smul.u32 2, %s191
      $region24: #{dice_loss_pallas.1} parent=15 // pred_fallthru
        _
    $region16: #{dice_loss_pallas.1} parent=5 // pred_fallthru
      _
    %p193 = scmp.le.s32.totalorder 1, %s10
    %p194 = scmp.lt.s32.totalorder %s10, 3
    %p195 = pnand %p193, %p194
    %p196 = pneg %p195
    // Predicated region
    $region25: #{dice_loss_pallas.1} parent=5 // pred_check
      _
    $region26: #{dice_loss_pallas.1} parent=5 // pred_check_branch
      %198 = sbr.rel (%p195) target = $region28
    $region27: #{dice_loss_pallas.1} parent=5 // pred_region
      %s199 = ssub.s32 %s10, 1
      %s200 = sadd.s32 %s21, %s22
      %s201 = smul.u32 2, %s200
      %p202 = scmp.lt.s32.totalorder %s20, 1
      %s203 = scalar_select %p202, %s20, 1
      %p204 = scmp.lt.s32.totalorder %s201, 1
      %s205 = scalar_select %p204, %s201, 1
      %s206 = smul.addr %s203, 2
      %s207 = sadd.s32 %s205, %s206
      %s208 = smul.addr %s207, 8
      %s209 = scalar_lea.vmem %s0, %s208
      %p210 = pneg %p59
      %p211 = pneg %p56
      %s212 = sadd.s32 %s21, %s22
      %s213 = smul.u32 2, %s212
      %p214 = scmp.lt.s32.totalorder %s20, 1
      %s215 = scalar_select %p214, %s20, 1
      %p216 = scmp.lt.s32.totalorder %s213, 1
      %s217 = scalar_select %p216, %s213, 1
      %s218 = smul.addr %s215, 2
      %s219 = sadd.s32 %s217, %s218
      %s220 = scalar_lea.vmem %s1, %s219
      %p221 = pneg %p89
      %p222 = pneg %p86
      %p223 = pneg %p117
      %p224 = pneg %p114
      %p225 = scmp.lt.s32.totalorder %s20, 1
      %s226 = scalar_select %p225, %s20, 1
      %p227 = scmp.lt.s32.totalorder %s21, 0
      %s228 = scalar_select %p227, %s21, 0
      %s229 = sadd.s32 %s228, %s226
      %s230 = smul.addr %s229, 8
      %s231 = scalar_lea.vmem %s2, %s230
      %p232 = pneg %p145
      %p233 = pneg %p142
      %p234 = scmp.lt.s32.totalorder %s20, 1
      %s235 = scalar_select %p234, %s20, 1
      %p236 = scmp.lt.s32.totalorder %s21, 0
      %s237 = scalar_select %p236, %s21, 0
      %s238 = sadd.s32 %s237, %s235
      %s239 = smul.addr %s238, 8
      %s240 = scalar_lea.vmem %s3, %s239
      %s241 = sadd.s32 %s21, %s22
      %s242 = smul.u32 2, %s241
      %p243 = scmp.lt.s32.totalorder %s20, 1
      %s244 = scalar_select %p243, %s20, 1
      %p245 = scmp.lt.s32.totalorder %s242, 1
      %s246 = scalar_select %p245, %s242, 1
      %s247 = smul.addr %s244, 2
      %s248 = sadd.s32 %s246, %s247
      %s249 = smul.addr %s248, 8
      %s250 = scalar_lea.vmem %s0, %s249
      %s251 = sadd.s32 %s21, %s22
      %s252 = smul.u32 2, %s251
      %s253 = sadd.s32 %s21, %s22
      %s254 = smul.u32 2, %s253
      %p255 = scmp.lt.s32.totalorder %s20, 1
      %s256 = scalar_select %p255, %s20, 1
      %p257 = scmp.lt.s32.totalorder %s254, 1
      %s258 = scalar_select %p257, %s254, 1
      %s259 = smul.addr %s256, 2
      %s260 = sadd.s32 %s258, %s259
      %s261 = scalar_lea.vmem %s1, %s260
      %s262 = sadd.s32 %s21, %s22
      %s263 = smul.u32 2, %s262
      %p264 = scmp.lt.s32.totalorder %s20, 1
      %s265 = scalar_select %p264, %s20, 1
      %p266 = scmp.lt.s32.totalorder %s21, 0
      %s267 = scalar_select %p266, %s21, 0
      %s268 = sadd.s32 %s267, %s265
      %s269 = smul.addr %s268, 8
      %s270 = scalar_lea.vmem %s2, %s269
      %p271 = scmp.lt.s32.totalorder %s20, 1
      %s272 = scalar_select %p271, %s20, 1
      %p273 = scmp.lt.s32.totalorder %s21, 0
      %s274 = scalar_select %p273, %s21, 0
      %s275 = sadd.s32 %s274, %s272
      %s276 = smul.addr %s275, 8
      %s277 = scalar_lea.vmem %s3, %s276
      %p278 = scmp.eq.s32.totalorder %s22, 0
      // Predicated region
      $region29: #{dice_loss_pallas.1} parent=27 // pred_check
        %p279 = pneg %p278
      $region30: #{dice_loss_pallas.1} parent=27 // pred_check_branch
        %281 = sbr.rel (%p279) target = $region32
      $region31: #{dice_loss_pallas.1} parent=27 // pred_region
        %vm282 = vcmask 5120
        %283 = vst.msk [vmem:[%s270] sm:$0x3f] %vm282, 0.0
        %284 = vst.msk [vmem:[%s277] sm:$0x3f] %vm282, 0.0
      $region32: #{dice_loss_pallas.1} parent=27 // pred_fallthru
        _
      %v285 = vld [vmem:[%s250] sm:$0x3f]
      %v286 = vld [vmem:[%s250 + $0x8] sm:$0x3f]
      %v287 = vld [vmem:[%s261] sm:$0x3]
      %v288 = vunpack.c.0.s8 %v287
      %vm289 = vcmask 1045504
      %v290 = vsel %vm289, %v285, -inf
      %v291 = vrot.slane %v290, 4
      %v292 = vmax.f32 %v290, %v291
      %v293 = vrot.slane %v292, 2
      %v294 = vmax.f32 %v292, %v293
      %v295 = vrot.slane %v294, 1
      %v296 = vmax.f32 %v294, %v295
      %v297 = vsel %vm289, %v286, -inf
      %v298 = vrot.slane %v297, 4
      %v299 = vmax.f32 %v297, %v298
      %v300 = vrot.slane %v299, 2
      %v301 = vmax.f32 %v299, %v300
      %v302 = vrot.slane %v301, 1
      %v303 = vmax.f32 %v301, %v302
      %v304 = vsub.f32 %v285, %v296
      %v305 = vsub.f32 %v286, %v303
      %v306 = vmul.f32 %v304, 1.442695
      %v307 = vpow.pop %v306
      %v308 = vmul.f32 %v305, 1.442695
      %v309 = vpow.pop %v308
      %v310 = vsel %vm289, %v307, 0.0
      %v311 = vrot.slane %v310, 4
      %v312 = vadd.f32 %v310, %v311
      %v313 = vrot.slane %v312, 2
      %v314 = vadd.f32 %v312, %v313
      %v315 = vrot.slane %v314, 1
      %v316 = vadd.f32 %v314, %v315
      %v317 = vsel %vm289, %v309, 0.0
      %v318 = vrot.slane %v317, 4
      %v319 = vadd.f32 %v317, %v318
      %v320 = vrot.slane %v319, 2
      %v321 = vadd.f32 %v319, %v320
      %v322 = vrot.slane %v321, 1
      %v323 = vadd.f32 %v321, %v322
      %v324 = vrcp.pop %v316
      %v325 = vrcp.pop %v323
      %v326 = vmul.f32 %v307, %v324
      %v327 = vmul.f32 %v309, %v325
      %v328 = vlaneseq
      %v329 = vshrl.u32 %v328, 7
      %v330 = vperm.slane %v288, 0
      %v331 = vperm.slane %v288, 4
      %v332 = vperm.slane %v330, 0
      %v333 = vperm.slane %v331, 0
      %vm334 = vcmp.eq.s32.totalorder %v329, %v332
      %vm335 = vcmp.eq.s32.totalorder %v329, %v333
      %v336 = vsel %vm334, %v326, 0.0
      %v337 = vsel %vm335, %v327, 0.0
      %v338 = vsel %vm289, %v336, 0.0
      %v339 = vsel %vm289, %v337, 0.0
      %v340 = vadd.f32 %v338, %v339
      %341 = vadd.xlane.f32.xlu0 %v340
      %v342 = vpop.xlane.xlu0 %341
      %v343 = vsel %vm334, 1, 0
      %v344 = vsel %vm335, 1, 0
      %v345 = vcvt.s32.f32 %v343
      %v346 = vcvt.s32.f32 %v344
      %v347 = vadd.f32 %v326, %v345
      %v348 = vadd.f32 %v327, %v346
      %v349 = vsel %vm289, %v347, 0.0
      %v350 = vsel %vm289, %v348, 0.0
      %v351 = vadd.f32 %v349, %v350
      %352 = vadd.xlane.f32.xlu0 %v351
      %v353 = vpop.xlane.xlu0 %352
      %v354 = vld [vmem:[%s270] sm:$0x3f]
      %v355 = vadd.f32 %v354, %v342
      %vm356 = vcmask 5120
      %357 = vst.msk [vmem:[%s270] sm:$0x3f] %vm356, %v355
      %v358 = vld [vmem:[%s277] sm:$0x3f]
      %v359 = vadd.f32 %v358, %v353
      %360 = vst.msk [vmem:[%s277] sm:$0x3f] %vm356, %v359
      %p361 = scmp.lt.s32.totalorder %s20, 1
      %s362 = scalar_select %p361, %s20, 1
      %p363 = scmp.lt.s32.totalorder %s21, 0
      %s364 = scalar_select %p363, %s21, 0
      %s365 = sadd.s32 %s364, %s362
      %s366 = smul.addr %s365, 8
      %s367 = scalar_lea.vmem %s2, %s366
      %p368 = scmp.lt.s32.totalorder %s20, 1
      %s369 = scalar_select %p368, %s20, 1
      %p370 = scmp.lt.s32.totalorder %s21, 0
      %s371 = scalar_select %p370, %s21, 0
      %s372 = sadd.s32 %s371, %s369
      %s373 = smul.addr %s372, 8
      %s374 = scalar_lea.vmem %s3, %s373
      // Predicated region
      $region33: #{dice_loss_pallas.1} parent=27 // pred_check
        %p375 = pneg %p114
      $region34: #{dice_loss_pallas.1} parent=27 // pred_check_branch
        %377 = sbr.rel (%p375) target = $region36
      $region35: #{dice_loss_pallas.1} parent=27 // pred_region
        _
      $region36: #{dice_loss_pallas.1} parent=27 // pred_fallthru
        _
      // Predicated region
      $region37: #{dice_loss_pallas.1} parent=27 // pred_check
        %p378 = pneg %p142
      $region38: #{dice_loss_pallas.1} parent=27 // pred_check_branch
        %380 = sbr.rel (%p378) target = $region40
      $region39: #{dice_loss_pallas.1} parent=27 // pred_region
        _
      $region40: #{dice_loss_pallas.1} parent=27 // pred_fallthru
        _
    $region28: #{dice_loss_pallas.1} parent=5 // pred_fallthru
      _
    %p381 = scmp.le.s32.totalorder 2, %s10
    // Predicated region
    $region41: #{dice_loss_pallas.1} parent=5 // pred_check
      %p382 = pneg %p381
    $region42: #{dice_loss_pallas.1} parent=5 // pred_check_branch
      %384 = sbr.rel (%p382) target = $region44
    $region43: #{dice_loss_pallas.1} parent=5 // pred_region
      %s385 = ssub.s32 %s10, 2
      // Predicated region
      $region45: #{dice_loss_pallas.1} parent=43 // pred_check
        %p386 = pneg %p120
      $region46: #{dice_loss_pallas.1} parent=43 // pred_check_branch
        %388 = sbr.rel (%p386) target = $region48
      $region47: #{dice_loss_pallas.1} parent=43 // pred_region
        %p389 = scmp.lt.s32.totalorder %s23, 1
        %s390 = scalar_select %p389, %s23, 1
        %p391 = scmp.lt.s32.totalorder %s24, 0
        %s392 = scalar_select %p391, %s24, 0
        %s393 = sadd.s32 %s392, %s390
        %s394 = smul.addr %s393, 8
        %s395 = scalar_lea.vmem %s2, %s394
      $region48: #{dice_loss_pallas.1} parent=43 // pred_fallthru
        _
      // Predicated region
      $region49: #{dice_loss_pallas.1} parent=43 // pred_check
        %p396 = pneg %p148
      $region50: #{dice_loss_pallas.1} parent=43 // pred_check_branch
        %398 = sbr.rel (%p396) target = $region52
      $region51: #{dice_loss_pallas.1} parent=43 // pred_region
        %p399 = scmp.lt.s32.totalorder %s23, 1
        %s400 = scalar_select %p399, %s23, 1
        %p401 = scmp.lt.s32.totalorder %s24, 0
        %s402 = scalar_select %p401, %s24, 0
        %s403 = sadd.s32 %s402, %s400
        %s404 = smul.addr %s403, 8
        %s405 = scalar_lea.vmem %s3, %s404
      $region52: #{dice_loss_pallas.1} parent=43 // pred_fallthru
        _
    $region44: #{dice_loss_pallas.1} parent=5 // pred_fallthru
      _
  $region6: #{dice_loss_pallas.1} parent=0 // loop_footer
    %s14 = sadd.s32 1, %s10
  $region7: #{dice_loss_pallas.1} parent=0 // loop_footer_branch
    %9 = sbr.rel target = $region3
  $region8: #{dice_loss_pallas.1} parent=0 // loop_exit
    _

</llo_original>
